<compile_context>
chip_gen: v6e
topology: v6e:2x2x1
jax: 0.10.0
libtpu: 0.0.40
codegen_flags: <defaults>
</compile_context>

<pallas_src>
import jax
import jax.numpy as jnp
from jax.experimental import pallas as pl
from jax.experimental.pallas import tpu as pltpu


def _round_up(x, m):
    return (x + m - 1) // m * m


def _build_band(weight, k_band, tile_w):
    """Banded (Toeplitz) weight matrices: band[di, r, c] = weight[di, r - c]
    when 0 <= r - c < kw, else 0, so that
        (strip @ band[di])[p, c] = sum_dj strip[p, c + dj] * weight[di, dj]."""
    kh, kw = weight.shape
    r = jnp.arange(k_band, dtype=jnp.int32)[:, None]
    c = jnp.arange(tile_w, dtype=jnp.int32)[None, :]
    d = r - c
    valid = (d >= 0) & (d < kw)
    taps = weight.astype(jnp.float32)[:, jnp.clip(d, 0, kw - 1)]  # (kh, k_band, tile_w)
    return jnp.where(valid[None], taps, 0.0)


def _make_kernel(kh, tile_h, tile_w, k_band):
    tile_in_h = tile_h + kh - 1

    def kernel(x_ref, band_ref, b_ref, o_ref):
        # x_ref:    (h_pad, w_pad)        resident, single-buffered VMEM block
        # band_ref: (kh, k_band, tile_w)  resident, single-buffered VMEM block
        # b_ref:    (1,)                  SMEM scalar bias
        # o_ref:    (tile_h, tile_w)      lane-dense output tile
        row0 = pl.multiple_of(pl.program_id(0) * tile_h, tile_h)
        col0 = pl.multiple_of(pl.program_id(1) * tile_w, tile_w)
        # One aligned load of the strip this output tile needs
        # (tile_h + kh - 1 halo rows, lane-aligned k_band halo columns).
        xin = x_ref[pl.ds(row0, tile_in_h), pl.ds(col0, k_band)]
        acc = None
        for di in range(kh):
            # kh sublane-offset row strips; all kw column shifts are folded
            # into the banded weights, so each kernel row is one MXU matmul.
            strip = xin[di:di + tile_h, :]
            part = jnp.dot(strip, band_ref[di],
                           preferred_element_type=jnp.float32)
            acc = part if acc is None else acc + part
        # Scalar bias folded into the single lane-dense store.
        o_ref[...] = (acc + b_ref[0]).astype(o_ref.dtype)

    return kernel


def conv2d_forward(x, weight, bias, *, tile_h=128, tile_w=256):
    """Pallas equivalent of Conv2D.forward: corr2d(x, weight) + bias."""
    H, W = x.shape
    kh, kw = weight.shape
    Ho, Wo = H - kh + 1, W - kw + 1
    if Ho < 1 or Wo < 1:
        raise ValueError(f"input {x.shape} smaller than kernel {weight.shape}")

    # bf16 inputs keep bf16 operands (f32 accumulation); everything else f32.
    io_dtype = jnp.bfloat16 if x.dtype == jnp.bfloat16 else jnp.float32

    # Large, aligned output tiles: rows multiple of 8, cols multiple of 128.
    tile_h = max(8, _round_up(min(tile_h, _round_up(Ho, 8)), 8))
    tile_w = max(128, _round_up(min(tile_w, _round_up(Wo, 128)), 128))
    grid_h = pl.cdiv(Ho, tile_h)
    grid_w = pl.cdiv(Wo, tile_w)

    # Lane-aligned column halo so the in-kernel strip load and the matmul
    # contraction dimension stay multiples of 128.
    halo_w = _round_up(kw - 1, 128) if kw > 1 else 0
    k_band = tile_w + halo_w

    # Pad the input just enough that every (tile_h + kh - 1, k_band) strip the
    # kernel reads stays in bounds.  Padded values only ever feed output
    # rows/cols >= (Ho, Wo), which Pallas masks away on writeback.
    h_pad = grid_h * tile_h + kh - 1
    w_pad = (grid_w - 1) * tile_w + k_band
    x_io = x.astype(io_dtype)
    if (h_pad, w_pad) != (H, W):
        x_io = jnp.pad(x_io, ((0, h_pad - H), (0, w_pad - W)))

    band = _build_band(weight, k_band, tile_w).astype(io_dtype)
    b_flat = jnp.asarray(bias, jnp.float32).reshape(-1)[:1]

    # VMEM budget: single-buffered resident input + band, double-buffered
    # output tiles, in-kernel temporaries (strip + accumulators), headroom.
    item = jnp.dtype(io_dtype).itemsize
    tile_in_h = tile_h + kh - 1
    needed = (_round_up(h_pad, 8) * w_pad * item            # resident input (x1)
              + kh * k_band * tile_w * item                 # resident band  (x1)
              + 2 * tile_h * tile_w * item                  # output tiles   (x2)
              + (_round_up(tile_in_h, 8) * k_band + 3 * tile_h * tile_w) * 4
              + (2 << 20))
    try:
        vmem_cap = int(pltpu.get_tpu_info().vmem_capacity_bytes)
    except Exception:  # conservative fallback: v7x has 64 MiB per TensorCore
        vmem_cap = 64 << 20
    vmem_limit = int(min(max(needed, 32 << 20),
                         max(32 << 20, (vmem_cap * 3) // 4)))

    kernel = _make_kernel(kh, tile_h, tile_w, k_band)

    return pl.pallas_call(
        kernel,
        out_shape=jax.ShapeDtypeStruct((Ho, Wo), io_dtype),
        grid=(grid_h, grid_w),
        in_specs=[
            # Whole padded input, constant block index -> DMA'd once,
            # single-buffered (resident) in VMEM.
            pl.BlockSpec((h_pad, w_pad), lambda i, j: (0, 0),
                         pipeline_mode=pl.Buffered(1)),
            # Banded weights, also resident and single-buffered.
            pl.BlockSpec((kh, k_band, tile_w), lambda i, j: (0, 0, 0),
                         pipeline_mode=pl.Buffered(1)),
            # Scalar bias in SMEM.
            pl.BlockSpec(memory_space=pltpu.MemorySpace.SMEM),
        ],
        out_specs=pl.BlockSpec((tile_h, tile_w), lambda i, j: (i, j)),
        compiler_params=pltpu.CompilerParams(
            dimension_semantics=("parallel", "parallel"),
            vmem_limit_bytes=vmem_limit,
        ),
    )(x_io, band, b_flat)


def corr2d_reference(x, k):
    """Pure-JAX reference of the PyTorch corr2d (shift-and-accumulate)."""
    kh, kw = k.shape
    Ho, Wo = x.shape[0] - kh + 1, x.shape[1] - kw + 1
    out = jnp.zeros((Ho, Wo), jnp.float32)
    for di in range(kh):
        for dj in range(kw):
            out = out + k[di, dj] * x[di:di + Ho, dj:dj + Wo]
    return out


def _check(out, x, weight, bias):
    ref = corr2d_reference(x, weight) + bias[0]
    assert out.shape == ref.shape, (out.shape, ref.shape)
    # The MXU may evaluate f32 operands via rounded bf16 passes depending on
    # generation / precision defaults, so use an operand-rounding-aware bound:
    # per-tap error <= 2^-8 * |w_t| * |x_t|; allow 2x margin + f32 accum slop.
    tol = 1e-5 + (2.0 ** -7) * corr2d_reference(jnp.abs(x), jnp.abs(weight))
    err = jnp.abs(out.astype(jnp.float32) - ref)
    assert bool(jnp.all(err <= tol)), float(jnp.max(err - tol))


if __name__ == "__main__":
    key = jax.random.PRNGKey(0)
    k_x1, k_x2, k_x3, k_w = jax.random.split(key, 4)

    kernel_size = (3, 3)
    # nn.Parameter(torch.rand(kernel_size)) -> uniform [0, 1)
    weight = jax.random.uniform(k_w, kernel_size, dtype=jnp.float32)
    # nn.Parameter(torch.zeros(1))
    bias = jnp.zeros((1,), dtype=jnp.float32)

    # Case 1: 64x64 input (single-tile path).
    x1 = jax.random.normal(k_x1, (64, 64), dtype=jnp.float32)
    out1 = jax.block_until_ready(conv2d_forward(x1, weight, bias))
    assert out1.shape == (62, 62)
    _check(out1, x1, weight, bias)

    # Case 2: the module's toy 16x16 input with a non-zero (trained) bias.
    x2 = jax.random.normal(k_x2, (16, 16), dtype=jnp.float32)
    bias2 = jnp.array([0.5], dtype=jnp.float32)
    out2 = jax.block_until_ready(conv2d_forward(x2, weight, bias2))
    assert out2.shape == (14, 14)
    _check(out2, x2, weight, bias2)

    # Case 3: non-aligned 200x300 input with smaller tiles to exercise a
    # multi-step 2-D grid and the masked trailing partial output blocks.
    x3 = jax.random.normal(k_x3, (200, 300), dtype=jnp.float32)
    out3 = jax.block_until_ready(
        conv2d_forward(x3, weight, bias, tile_h=64, tile_w=128))
    assert out3.shape == (198, 298)
    _check(out3, x3, weight, bias)

    print("KERNEL_OK")
</pallas_src>

<mosaic_0001>
module attributes {stable_mosaic.version = 11 : i64} {
  func.func @kernel(%arg0: i32, %arg1: i32, %arg2: memref<66x256xf32, #tpu.memory_space<vmem>>, %arg3: memref<3x256x128xf32, #tpu.memory_space<vmem>>, %arg4: memref<1xf32, #tpu.memory_space<smem>>, %arg5: memref<64x128xf32, #tpu.memory_space<vmem>>) attributes {dimension_semantics = [#tpu.dimension_semantics<parallel>, #tpu.dimension_semantics<parallel>], iteration_bounds = array<i64: 1, 1>, scalar_prefetch = 0 : i64, scratch_operands = 0 : i64, tpu.core_type = #tpu.core_type<tc>, window_params = [{pipeline_mode = #tpu.pipeline_mode<synchronous>, transform_indices = @transform_0, window_bounds = array<i64: 66, 256>}, {pipeline_mode = #tpu.pipeline_mode<synchronous>, transform_indices = @transform_1, window_bounds = array<i64: 3, 256, 128>}, {transform_indices = @transform_2, window_bounds = array<i64: 1>}, {transform_indices = @transform_3, window_bounds = array<i64: 64, 128>}]} {
    %c64_i32 = arith.constant 64 : i32
    %0 = arith.muli %arg0, %c64_i32 : i32
    %1 = tpu.assume_multiple %0, 64 : i32
    %c128_i32 = arith.constant 128 : i32
    %2 = arith.muli %arg1, %c128_i32 : i32
    %3 = tpu.assume_multiple %2, 128 : i32
    %4 = arith.index_cast %1 : i32 to index
    %5 = arith.index_cast %3 : i32 to index
    %6 = vector.load %arg2[%4, %5] : memref<66x256xf32, #tpu.memory_space<vmem>>, vector<66x256xf32>
    %7 = vector.extract_strided_slice %6 {offsets = [0, 0], sizes = [64, 256], strides = [1, 1]} : vector<66x256xf32> to vector<64x256xf32>
    %c0 = arith.constant 0 : index
    %c0_0 = arith.constant 0 : index
    %c0_1 = arith.constant 0 : index
    %8 = vector.load %arg3[%c0, %c0_0, %c0_1] : memref<3x256x128xf32, #tpu.memory_space<vmem>>, vector<1x256x128xf32>
    %9 = vector.shape_cast %8 : vector<1x256x128xf32> to vector<256x128xf32>
    %cst = arith.constant dense<0.000000e+00> : vector<64x128xf32>
    %10 = tpu.matmul %7, %9, %cst {dimension_numbers = #tpu.dot_dimension_numbers<[1], [0], [0], [1], [0, 0, 1, 1], [], []>} : vector<64x256xf32>, vector<256x128xf32>, vector<64x128xf32> -> vector<64x128xf32>
    %11 = vector.extract_strided_slice %6 {offsets = [1, 0], sizes = [64, 256], strides = [1, 1]} : vector<66x256xf32> to vector<64x256xf32>
    %c1 = arith.constant 1 : index
    %c0_2 = arith.constant 0 : index
    %c0_3 = arith.constant 0 : index
    %12 = vector.load %arg3[%c1, %c0_2, %c0_3] : memref<3x256x128xf32, #tpu.memory_space<vmem>>, vector<1x256x128xf32>
    %13 = vector.shape_cast %12 : vector<1x256x128xf32> to vector<256x128xf32>
    %cst_4 = arith.constant dense<0.000000e+00> : vector<64x128xf32>
    %14 = tpu.matmul %11, %13, %cst_4 {dimension_numbers = #tpu.dot_dimension_numbers<[1], [0], [0], [1], [0, 0, 1, 1], [], []>} : vector<64x256xf32>, vector<256x128xf32>, vector<64x128xf32> -> vector<64x128xf32>
    %15 = arith.addf %10, %14 : vector<64x128xf32>
    %16 = vector.extract_strided_slice %6 {offsets = [2, 0], sizes = [64, 256], strides = [1, 1]} : vector<66x256xf32> to vector<64x256xf32>
    %c2 = arith.constant 2 : index
    %c0_5 = arith.constant 0 : index
    %c0_6 = arith.constant 0 : index
    %17 = vector.load %arg3[%c2, %c0_5, %c0_6] : memref<3x256x128xf32, #tpu.memory_space<vmem>>, vector<1x256x128xf32>
    %18 = vector.shape_cast %17 : vector<1x256x128xf32> to vector<256x128xf32>
    %cst_7 = arith.constant dense<0.000000e+00> : vector<64x128xf32>
    %19 = tpu.matmul %16, %18, %cst_7 {dimension_numbers = #tpu.dot_dimension_numbers<[1], [0], [0], [1], [0, 0, 1, 1], [], []>} : vector<64x256xf32>, vector<256x128xf32>, vector<64x128xf32> -> vector<64x128xf32>
    %20 = arith.addf %15, %19 : vector<64x128xf32>
    %c0_8 = arith.constant 0 : index
    %21 = memref.load %arg4[%c0_8] : memref<1xf32, #tpu.memory_space<smem>>
    %22 = vector.broadcast %21 : f32 to vector<64x128xf32>
    %23 = arith.addf %20, %22 : vector<64x128xf32>
    %c0_9 = arith.constant 0 : index
    %c0_10 = arith.constant 0 : index
    %24 = vector.load %arg5[%c0_9, %c0_10] : memref<64x128xf32, #tpu.memory_space<vmem>>, vector<64x128xf32>
    tpu.vector_store %arg5[%c0_9, %c0_10], %23 {strides = array<i32>} : memref<64x128xf32, #tpu.memory_space<vmem>>, vector<64x128xf32>,
    return
  }
  func.func @transform_0(%arg0: i32, %arg1: i32) -> (i32, i32) {
    %c0_i32 = arith.constant 0 : i32
    %c0_i32_0 = arith.constant 0 : i32
    %c0_i32_1 = arith.constant 0 : i32
    return %c0_i32, %c0_i32_0 : i32, i32
  }
  func.func @transform_1(%arg0: i32, %arg1: i32) -> (i32, i32, i32) {
    %c0_i32 = arith.constant 0 : i32
    %c0_i32_0 = arith.constant 0 : i32
    %c0_i32_1 = arith.constant 0 : i32
    %c0_i32_2 = arith.constant 0 : i32
    return %c0_i32, %c0_i32_0, %c0_i32_1 : i32, i32, i32
  }
  func.func @transform_2(%arg0: i32, %arg1: i32) -> i32 {
    %c0_i32 = arith.constant 0 : i32
    %c0_i32_0 = arith.constant 0 : i32
    return %c0_i32 : i32
  }
  func.func @transform_3(%arg0: i32, %arg1: i32) -> (i32, i32) {
    %c0_i32 = arith.constant 0 : i32
    return %arg0, %arg1 : i32, i32
  }
}

</mosaic_0001>

<llo_original>
// kernel: tpu_custom_call.1
$region0: #{tpu_custom_call.1}
  #allocation0 [shape = 'u32[]', space=smem, size = 0x4, offset = 0x4, fixed_abs, tag = 'smem constant byte address 0x4 - core index']
  #allocation1 [shape = 'u32[144,128]{1,0:T(1,128)}', space=vmem, size = 0x12000, scoped, tag = 'internal scratch']
  #allocation2 [shape = 'f32[1]{0:T(128)S(6)}', space=smem, size = 0x200, scoped, tag = 'scoped memory for tpu_custom_call.1']
  %s0 = inlined_call_operand.hbm [shape: f32[66,256], index: 0, kind: input, shape index: {}]
  %s1 = inlined_call_operand.hbm [shape: f32[3,256,128], index: 1, kind: input, shape index: {}]
  %s2 = inlined_call_operand.<no memory space> [shape: f32[1], index: 2, kind: input, shape index: {}]
  %s3 = inlined_call_operand.hbm [shape: f32[62,62], index: 3, kind: output, shape index: {}]
  %s4 = sld [smem:[#allocation0]]
  $region30: #{tpu_custom_call.1} parent=0
    _
  %s6 = ssub.s32 1, %s4
  %s7 = scalar_select 0, %s6, %s4
  %8 = sst [smem:[#allocation2]] %s2
  $region1: #{tpu_custom_call.1} parent=0
    #allocation3 [shape = 'u8[73728]{0}', space=vmem, size = 0x12000, scoped, tag = 'input window, operand 0, single buffered']
    #allocation4 [shape = 's32[1]{0}', space=sflag, size = 0x4, scoped, tag = 'scoped memory for tpu_custom_call.1']
    #allocation5 [shape = 's32[1]{0}', space=sflag, size = 0x4, scoped, tag = 'scoped memory for tpu_custom_call.1']
    #allocation6 [shape = 'u8[393216]{0}', space=vmem, size = 0x60000, scoped, tag = 'input window, operand 1, single buffered']
    #allocation7 [shape = 's32[1]{0}', space=sflag, size = 0x4, scoped, tag = 'scoped memory for tpu_custom_call.1']
    #allocation8 [shape = 'u8[32768]{0}', space=vmem, size = 0x8000, scoped, tag = 'output window, operand 0, single buffered']
    %9 = vsyncpa [#allocation4], 0
    %10 = vsyncpa [#allocation7], 0
    %11 = vsyncpa [#allocation5], 0
    // Predicated region
    $region2: #{tpu_custom_call.1} parent=1 // pred_check
      _
    $region3: #{tpu_custom_call.1} parent=1 // pred_check_branch
      %13 = sbr.rel (0) target = $region5
    $region4: #{tpu_custom_call.1} parent=1 // pred_region
      %s15 = ssub.s32 2304, 2304
      %16 = vsyncadd [#allocation4], %s15
      %s17 = sshll.u32 [#allocation3], 4
      %s18 = int_to_ptr.vmem [resolvable:$true] %s17
      %23 = dma.hbm_to_vmem [thread:$0]  %s0, 2304, %s18, [#allocation4], 256, 256, 16
    $region5: #{tpu_custom_call.1} parent=1 // pred_fallthru
      _
    // Predicated region
    $region6: #{tpu_custom_call.1} parent=1 // pred_check
      _
    $region7: #{tpu_custom_call.1} parent=1 // pred_check_branch
      %25 = sbr.rel (0) target = $region9
    $region8: #{tpu_custom_call.1} parent=1 // pred_region
      %s27 = ssub.s32 12288, 12288
      %28 = vsyncadd [#allocation7], %s27
      %s29 = sshll.u32 [#allocation6], 4
      %s30 = int_to_ptr.vmem [resolvable:$true] %s29
      %35 = dma.hbm_to_vmem [thread:$0]  %s1, 12288, %s30, [#allocation7], 128, 128, 8
    $region9: #{tpu_custom_call.1} parent=1 // pred_fallthru
      _
    // Predicated region
    $region10: #{tpu_custom_call.1} parent=1 // pred_check
      _
    $region11: #{tpu_custom_call.1} parent=1 // pred_check_branch
      %37 = sbr.rel (0) target = $region13
    $region12: #{tpu_custom_call.1} parent=1 // pred_region
      _
    $region13: #{tpu_custom_call.1} parent=1 // pred_fallthru
      _
    // Predicated region
    $region14: #{tpu_custom_call.1} parent=1 // pred_check
      _
    $region15: #{tpu_custom_call.1} parent=1 // pred_check_branch
      %39 = sbr.rel (0) target = $region17
    $region16: #{tpu_custom_call.1} parent=1 // pred_region
      %40 = dma.done [#allocation4], 2304
    $region17: #{tpu_custom_call.1} parent=1 // pred_fallthru
      _
    // Predicated region
    $region18: #{tpu_custom_call.1} parent=1 // pred_check
      _
    $region19: #{tpu_custom_call.1} parent=1 // pred_check_branch
      %42 = sbr.rel (0) target = $region21
    $region20: #{tpu_custom_call.1} parent=1 // pred_region
      %43 = dma.done [#allocation7], 12288
    $region21: #{tpu_custom_call.1} parent=1 // pred_fallthru
      _
    %s44 = smul.u32 0, 64
    %s45 = smul.u32 0, 128
    %s46 = sshra.s32 %s45, 7
    %s47 = sand.u32 %s45, 127
    %s48 = sshra.s32 %s44, 3
    %s49 = sand.u32 %s44, 7
    %s50 = smul.u32 %s48, 2
    %s51 = sadd.s32 %s46, %s50
    %s52 = smul.addr %s51, 8
    %s53 = scalar_lea.vmem [#allocation3], %s52
    %v54 = vld [vmem:[%s53] sm:$0xff]
    %v55 = vld [vmem:[%s53 + $0x8] sm:$0xff]
    %v56 = vld [vmem:[%s53 + $0x10] sm:$0xff]
    %v57 = vld [vmem:[%s53 + $0x18] sm:$0xff]
    %v58 = vld [vmem:[%s53 + $0x20] sm:$0xff]
    %v59 = vld [vmem:[%s53 + $0x28] sm:$0xff]
    %v60 = vld [vmem:[%s53 + $0x30] sm:$0xff]
    %v61 = vld [vmem:[%s53 + $0x38] sm:$0xff]
    %v62 = vld [vmem:[%s53 + $0x40] sm:$0xff]
    %v63 = vld [vmem:[%s53 + $0x48] sm:$0xff]
    %v64 = vld [vmem:[%s53 + $0x50] sm:$0xff]
    %v65 = vld [vmem:[%s53 + $0x58] sm:$0xff]
    %v66 = vld [vmem:[%s53 + $0x60] sm:$0xff]
    %v67 = vld [vmem:[%s53 + $0x68] sm:$0xff]
    %v68 = vld [vmem:[%s53 + $0x70] sm:$0xff]
    %v69 = vld [vmem:[%s53 + $0x78] sm:$0xff]
    %v70 = vld [vmem:[%s53 + $0x80] sm:$0x3]
    %v71 = vld [vmem:[%s53 + $0x88] sm:$0x3]
    %v72 = vld [vmem:[#allocation6] sm:$0xff]
    %v73 = vld [vmem:[#allocation6 + $0x8] sm:$0xff]
    %v74 = vld [vmem:[#allocation6 + $0x10] sm:$0xff]
    %v75 = vld [vmem:[#allocation6 + $0x18] sm:$0xff]
    %v76 = vld [vmem:[#allocation6 + $0x20] sm:$0xff]
    %v77 = vld [vmem:[#allocation6 + $0x28] sm:$0xff]
    %v78 = vld [vmem:[#allocation6 + $0x30] sm:$0xff]
    %v79 = vld [vmem:[#allocation6 + $0x38] sm:$0xff]
    %v80 = vld [vmem:[#allocation6 + $0x40] sm:$0xff]
    %v81 = vld [vmem:[#allocation6 + $0x48] sm:$0xff]
    %v82 = vld [vmem:[#allocation6 + $0x50] sm:$0xff]
    %v83 = vld [vmem:[#allocation6 + $0x58] sm:$0xff]
    %v84 = vld [vmem:[#allocation6 + $0x60] sm:$0xff]
    %v85 = vld [vmem:[#allocation6 + $0x68] sm:$0xff]
    %v86 = vld [vmem:[#allocation6 + $0x70] sm:$0xff]
    %v87 = vld [vmem:[#allocation6 + $0x78] sm:$0xff]
    %v88 = vld [vmem:[#allocation6 + $0x80] sm:$0xff]
    %v89 = vld [vmem:[#allocation6 + $0x88] sm:$0xff]
    %v90 = vld [vmem:[#allocation6 + $0x90] sm:$0xff]
    %v91 = vld [vmem:[#allocation6 + $0x98] sm:$0xff]
    %v92 = vld [vmem:[#allocation6 + $0xa0] sm:$0xff]
    %v93 = vld [vmem:[#allocation6 + $0xa8] sm:$0xff]
    %v94 = vld [vmem:[#allocation6 + $0xb0] sm:$0xff]
    %v95 = vld [vmem:[#allocation6 + $0xb8] sm:$0xff]
    %v96 = vld [vmem:[#allocation6 + $0xc0] sm:$0xff]
    %v97 = vld [vmem:[#allocation6 + $0xc8] sm:$0xff]
    %v98 = vld [vmem:[#allocation6 + $0xd0] sm:$0xff]
    %v99 = vld [vmem:[#allocation6 + $0xd8] sm:$0xff]
    %v100 = vld [vmem:[#allocation6 + $0xe0] sm:$0xff]
    %v101 = vld [vmem:[#allocation6 + $0xe8] sm:$0xff]
    %v102 = vld [vmem:[#allocation6 + $0xf0] sm:$0xff]
    %v103 = vld [vmem:[#allocation6 + $0xf8] sm:$0xff]
    %s104 = scalar_lea.vmem [#allocation6], 256
    %v105 = vld [vmem:[%s104] sm:$0xff]
    %v106 = vld [vmem:[%s104 + $0x8] sm:$0xff]
    %v107 = vld [vmem:[%s104 + $0x10] sm:$0xff]
    %v108 = vld [vmem:[%s104 + $0x18] sm:$0xff]
    %v109 = vld [vmem:[%s104 + $0x20] sm:$0xff]
    %v110 = vld [vmem:[%s104 + $0x28] sm:$0xff]
    %v111 = vld [vmem:[%s104 + $0x30] sm:$0xff]
    %v112 = vld [vmem:[%s104 + $0x38] sm:$0xff]
    %v113 = vld [vmem:[%s104 + $0x40] sm:$0xff]
    %v114 = vld [vmem:[%s104 + $0x48] sm:$0xff]
    %v115 = vld [vmem:[%s104 + $0x50] sm:$0xff]
    %v116 = vld [vmem:[%s104 + $0x58] sm:$0xff]
    %v117 = vld [vmem:[%s104 + $0x60] sm:$0xff]
    %v118 = vld [vmem:[%s104 + $0x68] sm:$0xff]
    %v119 = vld [vmem:[%s104 + $0x70] sm:$0xff]
    %v120 = vld [vmem:[%s104 + $0x78] sm:$0xff]
    %v121 = vld [vmem:[%s104 + $0x80] sm:$0xff]
    %v122 = vld [vmem:[%s104 + $0x88] sm:$0xff]
    %v123 = vld [vmem:[%s104 + $0x90] sm:$0xff]
    %v124 = vld [vmem:[%s104 + $0x98] sm:$0xff]
    %v125 = vld [vmem:[%s104 + $0xa0] sm:$0xff]
    %v126 = vld [vmem:[%s104 + $0xa8] sm:$0xff]
    %v127 = vld [vmem:[%s104 + $0xb0] sm:$0xff]
    %v128 = vld [vmem:[%s104 + $0xb8] sm:$0xff]
    %v129 = vld [vmem:[%s104 + $0xc0] sm:$0xff]
    %v130 = vld [vmem:[%s104 + $0xc8] sm:$0xff]
    %v131 = vld [vmem:[%s104 + $0xd0] sm:$0xff]
    %v132 = vld [vmem:[%s104 + $0xd8] sm:$0xff]
    %v133 = vld [vmem:[%s104 + $0xe0] sm:$0xff]
    %v134 = vld [vmem:[%s104 + $0xe8] sm:$0xff]
    %v135 = vld [vmem:[%s104 + $0xf0] sm:$0xff]
    %v136 = vld [vmem:[%s104 + $0xf8] sm:$0xff]
    %vm155 = vcmask 1046528
    %v156 = vrot.slane %v54, 1
    %v157 = vrot.slane %v56, 1
    %v158 = vsel %vm155, %v156, %v157
    %v159 = vrot.slane %v55, 1
    %v160 = vrot.slane %v57, 1
    %v161 = vsel %vm155, %v159, %v160
    %v162 = vrot.slane %v58, 1
    %v163 = vsel %vm155, %v157, %v162
    %v164 = vrot.slane %v59, 1
    %v165 = vsel %vm155, %v160, %v164
    %v166 = vrot.slane %v60, 1
    %v167 = vsel %vm155, %v162, %v166
    %v168 = vrot.slane %v61, 1
    %v169 = vsel %vm155, %v164, %v168
    %v170 = vrot.slane %v62, 1
    %v171 = vsel %vm155, %v166, %v170
    %v172 = vrot.slane %v63, 1
    %v173 = vsel %vm155, %v168, %v172
    %v174 = vrot.slane %v64, 1
    %v175 = vsel %vm155, %v170, %v174
    %v176 = vrot.slane %v65, 1
    %v177 = vsel %vm155, %v172, %v176
    %v178 = vrot.slane %v66, 1
    %v179 = vsel %vm155, %v174, %v178
    %v180 = vrot.slane %v67, 1
    %v181 = vsel %vm155, %v176, %v180
    %v182 = vrot.slane %v68, 1
    %v183 = vsel %vm155, %v178, %v182
    %v184 = vrot.slane %v69, 1
    %v185 = vsel %vm155, %v180, %v184
    %v186 = vrot.slane %v70, 1
    %v187 = vsel %vm155, %v182, %v186
    %v188 = vrot.slane %v71, 1
    %v189 = vsel %vm155, %v184, %v188
    %206 = vmatprep.subr.mxu0 0.0
    %207 = vmatpush1.msra.mxu0 %v120
    %208 = vmatprep.subr.mxu0 0.0
    %209 = vmatpush1.msra.mxu0 %v119
    %210 = vmatprep.subr.mxu0 0.0
    %211 = vmatpush1.msra.mxu0 %v118
    %212 = vmatprep.subr.mxu0 0.0
    %213 = vmatpush1.msra.mxu0 %v117
    %214 = vmatprep.subr.mxu0 0.0
    %215 = vmatpush1.msra.mxu0 %v116
    %216 = vmatprep.subr.mxu0 0.0
    %217 = vmatpush1.msra.mxu0 %v115
    %218 = vmatprep.subr.mxu0 0.0
    %219 = vmatpush1.msra.mxu0 %v114
    %220 = vmatprep.subr.mxu0 0.0
    %221 = vmatpush1.msra.mxu0 %v113
    %222 = vmatprep.subr.mxu0 0.0
    %223 = vmatpush1.msra.mxu0 %v112
    %224 = vmatprep.subr.mxu0 0.0
    %225 = vmatpush1.msra.mxu0 %v111
    %226 = vmatprep.subr.mxu0 0.0
    %227 = vmatpush1.msra.mxu0 %v110
    %228 = vmatprep.subr.mxu0 0.0
    %229 = vmatpush1.msra.mxu0 %v109
    %230 = vmatprep.subr.mxu0 0.0
    %231 = vmatpush1.msra.mxu0 %v108
    %232 = vmatprep.subr.mxu0 0.0
    %233 = vmatpush1.msra.mxu0 %v107
    %234 = vmatprep.subr.mxu0 0.0
    %235 = vmatpush1.msra.mxu0 %v106
    %236 = vmatprep.subr.mxu0 0.0
    %237 = vmatpush1.msra.mxu0 %v105
    %238 = vmatprep.subr.mxu0 0.0
    %239 = vmatpush2.msra.mxu0 %v136
    %240 = vmatprep.subr.mxu0 0.0
    %241 = vmatpush2.msra.mxu0 %v135
    %242 = vmatprep.subr.mxu0 0.0
    %243 = vmatpush2.msra.mxu0 %v134
    %244 = vmatprep.subr.mxu0 0.0
    %245 = vmatpush2.msra.mxu0 %v133
    %246 = vmatprep.subr.mxu0 0.0
    %247 = vmatpush2.msra.mxu0 %v132
    %248 = vmatprep.subr.mxu0 0.0
    %249 = vmatpush2.msra.mxu0 %v131
    %250 = vmatprep.subr.mxu0 0.0
    %251 = vmatpush2.msra.mxu0 %v130
    %252 = vmatprep.subr.mxu0 0.0
    %253 = vmatpush2.msra.mxu0 %v129
    %254 = vmatprep.subr.mxu0 0.0
    %255 = vmatpush2.msra.mxu0 %v128
    %256 = vmatprep.subr.mxu0 0.0
    %257 = vmatpush2.msra.mxu0 %v127
    %258 = vmatprep.subr.mxu0 0.0
    %259 = vmatpush2.msra.mxu0 %v126
    %260 = vmatprep.subr.mxu0 0.0
    %261 = vmatpush2.msra.mxu0 %v125
    %262 = vmatprep.subr.mxu0 0.0
    %263 = vmatpush2.msra.mxu0 %v124
    %264 = vmatprep.subr.mxu0 0.0
    %265 = vmatpush2.msra.mxu0 %v123
    %266 = vmatprep.subr.mxu0 0.0
    %267 = vmatpush2.msra.mxu0 %v122
    %268 = vmatprep.subr.mxu0 0.0
    %269 = vmatpush2.msra.mxu0 %v121
    %270 = vmatprep.mubr.f32.mxu0 %v161
    %271 = vmatmul.mubr.f32.gmra.mxu0 %v158
    %v272 = vpop.f32.mrf.mxu0
    %v273 = vadd.f32 0.0, %v272
    %v274 = vpop.f32.mrf.mxu0
    %275 = vmatprep.mubr.f32.mxu0 %v165
    %276 = vmatmul.mubr.f32.gmra.mxu0 %v163
    %v277 = vpop.f32.mrf.mxu0
    %v278 = vadd.f32 0.0, %v277
    %v279 = vpop.f32.mrf.mxu0
    %280 = vmatprep.mubr.f32.mxu0 %v169
    %281 = vmatmul.mubr.f32.gmra.mxu0 %v167
    %v282 = vpop.f32.mrf.mxu0
    %v283 = vadd.f32 0.0, %v282
    %v284 = vpop.f32.mrf.mxu0
    %285 = vmatprep.mubr.f32.mxu0 %v173
    %286 = vmatmul.mubr.f32.gmra.mxu0 %v171
    %v287 = vpop.f32.mrf.mxu0
    %v288 = vadd.f32 0.0, %v287
    %v289 = vpop.f32.mrf.mxu0
    %290 = vmatprep.mubr.f32.mxu0 %v177
    %291 = vmatmul.mubr.f32.gmra.mxu0 %v175
    %v292 = vpop.f32.mrf.mxu0
    %v293 = vadd.f32 0.0, %v292
    %v294 = vpop.f32.mrf.mxu0
    %295 = vmatprep.mubr.f32.mxu0 %v181
    %296 = vmatmul.mubr.f32.gmra.mxu0 %v179
    %v297 = vpop.f32.mrf.mxu0
    %v298 = vadd.f32 0.0, %v297
    %v299 = vpop.f32.mrf.mxu0
    %300 = vmatprep.mubr.f32.mxu0 %v185
    %301 = vmatmul.mubr.f32.gmra.mxu0 %v183
    %v302 = vpop.f32.mrf.mxu0
    %v303 = vadd.f32 0.0, %v302
    %v304 = vpop.f32.mrf.mxu0
    %305 = vmatprep.mubr.f32.mxu0 %v189
    %306 = vmatmul.mubr.f32.gmra.mxu0 %v187
    %v307 = vpop.f32.mrf.mxu0
    %v308 = vadd.f32 0.0, %v307
    %v309 = vpop.f32.mrf.mxu0
    %310 = vdwg.mxu0
    %311 = vmatprep.subr.mxu0 0.0
    %312 = vmatpush1.msra.mxu0 %v87
    %313 = vmatprep.subr.mxu0 0.0
    %314 = vmatpush1.msra.mxu0 %v86
    %315 = vmatprep.subr.mxu0 0.0
    %316 = vmatpush1.msra.mxu0 %v85
    %317 = vmatprep.subr.mxu0 0.0
    %318 = vmatpush1.msra.mxu0 %v84
    %319 = vmatprep.subr.mxu0 0.0
    %320 = vmatpush1.msra.mxu0 %v83
    %321 = vmatprep.subr.mxu0 0.0
    %322 = vmatpush1.msra.mxu0 %v82
    %323 = vmatprep.subr.mxu0 0.0
    %324 = vmatpush1.msra.mxu0 %v81
    %325 = vmatprep.subr.mxu0 0.0
    %326 = vmatpush1.msra.mxu0 %v80
    %327 = vmatprep.subr.mxu0 0.0
    %328 = vmatpush1.msra.mxu0 %v79
    %329 = vmatprep.subr.mxu0 0.0
    %330 = vmatpush1.msra.mxu0 %v78
    %331 = vmatprep.subr.mxu0 0.0
    %332 = vmatpush1.msra.mxu0 %v77
    %333 = vmatprep.subr.mxu0 0.0
    %334 = vmatpush1.msra.mxu0 %v76
    %335 = vmatprep.subr.mxu0 0.0
    %336 = vmatpush1.msra.mxu0 %v75
    %337 = vmatprep.subr.mxu0 0.0
    %338 = vmatpush1.msra.mxu0 %v74
    %339 = vmatprep.subr.mxu0 0.0
    %340 = vmatpush1.msra.mxu0 %v73
    %341 = vmatprep.subr.mxu0 0.0
    %342 = vmatpush1.msra.mxu0 %v72
    %343 = vmatprep.subr.mxu0 0.0
    %344 = vmatpush2.msra.mxu0 %v103
    %345 = vmatprep.subr.mxu0 0.0
    %346 = vmatpush2.msra.mxu0 %v102
    %347 = vmatprep.subr.mxu0 0.0
    %348 = vmatpush2.msra.mxu0 %v101
    %349 = vmatprep.subr.mxu0 0.0
    %350 = vmatpush2.msra.mxu0 %v100
    %351 = vmatprep.subr.mxu0 0.0
    %352 = vmatpush2.msra.mxu0 %v99
    %353 = vmatprep.subr.mxu0 0.0
    %354 = vmatpush2.msra.mxu0 %v98
    %355 = vmatprep.subr.mxu0 0.0
    %356 = vmatpush2.msra.mxu0 %v97
    %357 = vmatprep.subr.mxu0 0.0
    %358 = vmatpush2.msra.mxu0 %v96
    %359 = vmatprep.subr.mxu0 0.0
    %360 = vmatpush2.msra.mxu0 %v95
    %361 = vmatprep.subr.mxu0 0.0
    %362 = vmatpush2.msra.mxu0 %v94
    %363 = vmatprep.subr.mxu0 0.0
    %364 = vmatpush2.msra.mxu0 %v93
    %365 = vmatprep.subr.mxu0 0.0
    %366 = vmatpush2.msra.mxu0 %v92
    %367 = vmatprep.subr.mxu0 0.0
    %368 = vmatpush2.msra.mxu0 %v91
    %369 = vmatprep.subr.mxu0 0.0
    %370 = vmatpush2.msra.mxu0 %v90
    %371 = vmatprep.subr.mxu0 0.0
    %372 = vmatpush2.msra.mxu0 %v89
    %373 = vmatprep.subr.mxu0 0.0
    %374 = vmatpush2.msra.mxu0 %v88
    %375 = vmatprep.mubr.f32.mxu0 %v55
    %376 = vmatmul.mubr.f32.gmra.mxu0 %v54
    %v377 = vpop.f32.mrf.mxu0
    %v378 = vadd.f32 %v273, %v377
    %v379 = vpop.f32.mrf.mxu0
    %380 = vmatprep.mubr.f32.mxu0 %v57
    %381 = vmatmul.mubr.f32.gmra.mxu0 %v56
    %v382 = vpop.f32.mrf.mxu0
    %v383 = vadd.f32 %v278, %v382
    %v384 = vpop.f32.mrf.mxu0
    %385 = vmatprep.mubr.f32.mxu0 %v59
    %386 = vmatmul.mubr.f32.gmra.mxu0 %v58
    %v387 = vpop.f32.mrf.mxu0
    %v388 = vadd.f32 %v283, %v387
    %v389 = vpop.f32.mrf.mxu0
    %390 = vmatprep.mubr.f32.mxu0 %v61
    %391 = vmatmul.mubr.f32.gmra.mxu0 %v60
    %v392 = vpop.f32.mrf.mxu0
    %v393 = vadd.f32 %v288, %v392
    %v394 = vpop.f32.mrf.mxu0
    %395 = vmatprep.mubr.f32.mxu0 %v63
    %396 = vmatmul.mubr.f32.gmra.mxu0 %v62
    %v397 = vpop.f32.mrf.mxu0
    %v398 = vadd.f32 %v293, %v397
    %v399 = vpop.f32.mrf.mxu0
    %400 = vmatprep.mubr.f32.mxu0 %v65
    %401 = vmatmul.mubr.f32.gmra.mxu0 %v64
    %v402 = vpop.f32.mrf.mxu0
    %v403 = vadd.f32 %v298, %v402
    %v404 = vpop.f32.mrf.mxu0
    %405 = vmatprep.mubr.f32.mxu0 %v67
    %406 = vmatmul.mubr.f32.gmra.mxu0 %v66
    %v407 = vpop.f32.mrf.mxu0
    %v408 = vadd.f32 %v303, %v407
    %v409 = vpop.f32.mrf.mxu0
    %410 = vmatprep.mubr.f32.mxu0 %v69
    %411 = vmatmul.mubr.f32.gmra.mxu0 %v68
    %v412 = vpop.f32.mrf.mxu0
    %v413 = vadd.f32 %v308, %v412
    %v414 = vpop.f32.mrf.mxu0
    %415 = vdwg.mxu0
    %s416 = scalar_lea.vmem [#allocation6], 512
    %v417 = vld [vmem:[%s416] sm:$0xff]
    %v418 = vld [vmem:[%s416 + $0x8] sm:$0xff]
    %v419 = vld [vmem:[%s416 + $0x10] sm:$0xff]
    %v420 = vld [vmem:[%s416 + $0x18] sm:$0xff]
    %v421 = vld [vmem:[%s416 + $0x20] sm:$0xff]
    %v422 = vld [vmem:[%s416 + $0x28] sm:$0xff]
    %v423 = vld [vmem:[%s416 + $0x30] sm:$0xff]
    %v424 = vld [vmem:[%s416 + $0x38] sm:$0xff]
    %v425 = vld [vmem:[%s416 + $0x40] sm:$0xff]
    %v426 = vld [vmem:[%s416 + $0x48] sm:$0xff]
    %v427 = vld [vmem:[%s416 + $0x50] sm:$0xff]
    %v428 = vld [vmem:[%s416 + $0x58] sm:$0xff]
    %v429 = vld [vmem:[%s416 + $0x60] sm:$0xff]
    %v430 = vld [vmem:[%s416 + $0x68] sm:$0xff]
    %v431 = vld [vmem:[%s416 + $0x70] sm:$0xff]
    %v432 = vld [vmem:[%s416 + $0x78] sm:$0xff]
    %v433 = vld [vmem:[%s416 + $0x80] sm:$0xff]
    %v434 = vld [vmem:[%s416 + $0x88] sm:$0xff]
    %v435 = vld [vmem:[%s416 + $0x90] sm:$0xff]
    %v436 = vld [vmem:[%s416 + $0x98] sm:$0xff]
    %v437 = vld [vmem:[%s416 + $0xa0] sm:$0xff]
    %v438 = vld [vmem:[%s416 + $0xa8] sm:$0xff]
    %v439 = vld [vmem:[%s416 + $0xb0] sm:$0xff]
    %v440 = vld [vmem:[%s416 + $0xb8] sm:$0xff]
    %v441 = vld [vmem:[%s416 + $0xc0] sm:$0xff]
    %v442 = vld [vmem:[%s416 + $0xc8] sm:$0xff]
    %v443 = vld [vmem:[%s416 + $0xd0] sm:$0xff]
    %v444 = vld [vmem:[%s416 + $0xd8] sm:$0xff]
    %v445 = vld [vmem:[%s416 + $0xe0] sm:$0xff]
    %v446 = vld [vmem:[%s416 + $0xe8] sm:$0xff]
    %v447 = vld [vmem:[%s416 + $0xf0] sm:$0xff]
    %v448 = vld [vmem:[%s416 + $0xf8] sm:$0xff]
    %vm449 = vcmask 1045504
    %v450 = vrot.slane %v54, 2
    %v451 = vrot.slane %v56, 2
    %v452 = vsel %vm449, %v450, %v451
    %v453 = vrot.slane %v55, 2
    %v454 = vrot.slane %v57, 2
    %v455 = vsel %vm449, %v453, %v454
    %v456 = vrot.slane %v58, 2
    %v457 = vsel %vm449, %v451, %v456
    %v458 = vrot.slane %v59, 2
    %v459 = vsel %vm449, %v454, %v458
    %v460 = vrot.slane %v60, 2
    %v461 = vsel %vm449, %v456, %v460
    %v462 = vrot.slane %v61, 2
    %v463 = vsel %vm449, %v458, %v462
    %v464 = vrot.slane %v62, 2
    %v465 = vsel %vm449, %v460, %v464
    %v466 = vrot.slane %v63, 2
    %v467 = vsel %vm449, %v462, %v466
    %v468 = vrot.slane %v64, 2
    %v469 = vsel %vm449, %v464, %v468
    %v470 = vrot.slane %v65, 2
    %v471 = vsel %vm449, %v466, %v470
    %v472 = vrot.slane %v66, 2
    %v473 = vsel %vm449, %v468, %v472
    %v474 = vrot.slane %v67, 2
    %v475 = vsel %vm449, %v470, %v474
    %v476 = vrot.slane %v68, 2
    %v477 = vsel %vm449, %v472, %v476
    %v478 = vrot.slane %v69, 2
    %v479 = vsel %vm449, %v474, %v478
    %v480 = vrot.slane %v70, 2
    %v481 = vsel %vm449, %v476, %v480
    %v482 = vrot.slane %v71, 2
    %v483 = vsel %vm449, %v478, %v482
    %500 = vmatprep.subr.mxu0 0.0
    %501 = vmatpush1.msra.mxu0 %v432
    %502 = vmatprep.subr.mxu0 0.0
    %503 = vmatpush1.msra.mxu0 %v431
    %504 = vmatprep.subr.mxu0 0.0
    %505 = vmatpush1.msra.mxu0 %v430
    %506 = vmatprep.subr.mxu0 0.0
    %507 = vmatpush1.msra.mxu0 %v429
    %508 = vmatprep.subr.mxu0 0.0
    %509 = vmatpush1.msra.mxu0 %v428
    %510 = vmatprep.subr.mxu0 0.0
    %511 = vmatpush1.msra.mxu0 %v427
    %512 = vmatprep.subr.mxu0 0.0
    %513 = vmatpush1.msra.mxu0 %v426
    %514 = vmatprep.subr.mxu0 0.0
    %515 = vmatpush1.msra.mxu0 %v425
    %516 = vmatprep.subr.mxu0 0.0
    %517 = vmatpush1.msra.mxu0 %v424
    %518 = vmatprep.subr.mxu0 0.0
    %519 = vmatpush1.msra.mxu0 %v423
    %520 = vmatprep.subr.mxu0 0.0
    %521 = vmatpush1.msra.mxu0 %v422
    %522 = vmatprep.subr.mxu0 0.0
    %523 = vmatpush1.msra.mxu0 %v421
    %524 = vmatprep.subr.mxu0 0.0
    %525 = vmatpush1.msra.mxu0 %v420
    %526 = vmatprep.subr.mxu0 0.0
    %527 = vmatpush1.msra.mxu0 %v419
    %528 = vmatprep.subr.mxu0 0.0
    %529 = vmatpush1.msra.mxu0 %v418
    %530 = vmatprep.subr.mxu0 0.0
    %531 = vmatpush1.msra.mxu0 %v417
    %532 = vmatprep.subr.mxu0 0.0
    %533 = vmatpush2.msra.mxu0 %v448
    %534 = vmatprep.subr.mxu0 0.0
    %535 = vmatpush2.msra.mxu0 %v447
    %536 = vmatprep.subr.mxu0 0.0
    %537 = vmatpush2.msra.mxu0 %v446
    %538 = vmatprep.subr.mxu0 0.0
    %539 = vmatpush2.msra.mxu0 %v445
    %540 = vmatprep.subr.mxu0 0.0
    %541 = vmatpush2.msra.mxu0 %v444
    %542 = vmatprep.subr.mxu0 0.0
    %543 = vmatpush2.msra.mxu0 %v443
    %544 = vmatprep.subr.mxu0 0.0
    %545 = vmatpush2.msra.mxu0 %v442
    %546 = vmatprep.subr.mxu0 0.0
    %547 = vmatpush2.msra.mxu0 %v441
    %548 = vmatprep.subr.mxu0 0.0
    %549 = vmatpush2.msra.mxu0 %v440
    %550 = vmatprep.subr.mxu0 0.0
    %551 = vmatpush2.msra.mxu0 %v439
    %552 = vmatprep.subr.mxu0 0.0
    %553 = vmatpush2.msra.mxu0 %v438
    %554 = vmatprep.subr.mxu0 0.0
    %555 = vmatpush2.msra.mxu0 %v437
    %556 = vmatprep.subr.mxu0 0.0
    %557 = vmatpush2.msra.mxu0 %v436
    %558 = vmatprep.subr.mxu0 0.0
    %559 = vmatpush2.msra.mxu0 %v435
    %560 = vmatprep.subr.mxu0 0.0
    %561 = vmatpush2.msra.mxu0 %v434
    %562 = vmatprep.subr.mxu0 0.0
    %563 = vmatpush2.msra.mxu0 %v433
    %564 = vmatprep.mubr.f32.mxu0 %v455
    %565 = vmatmul.mubr.f32.gmra.mxu0 %v452
    %v566 = vpop.f32.mrf.mxu0
    %v567 = vadd.f32 0.0, %v566
    %v568 = vpop.f32.mrf.mxu0
    %569 = vmatprep.mubr.f32.mxu0 %v459
    %570 = vmatmul.mubr.f32.gmra.mxu0 %v457
    %v571 = vpop.f32.mrf.mxu0
    %v572 = vadd.f32 0.0, %v571
    %v573 = vpop.f32.mrf.mxu0
    %574 = vmatprep.mubr.f32.mxu0 %v463
    %575 = vmatmul.mubr.f32.gmra.mxu0 %v461
    %v576 = vpop.f32.mrf.mxu0
    %v577 = vadd.f32 0.0, %v576
    %v578 = vpop.f32.mrf.mxu0
    %579 = vmatprep.mubr.f32.mxu0 %v467
    %580 = vmatmul.mubr.f32.gmra.mxu0 %v465
    %v581 = vpop.f32.mrf.mxu0
    %v582 = vadd.f32 0.0, %v581
    %v583 = vpop.f32.mrf.mxu0
    %584 = vmatprep.mubr.f32.mxu0 %v471
    %585 = vmatmul.mubr.f32.gmra.mxu0 %v469
    %v586 = vpop.f32.mrf.mxu0
    %v587 = vadd.f32 0.0, %v586
    %v588 = vpop.f32.mrf.mxu0
    %589 = vmatprep.mubr.f32.mxu0 %v475
    %590 = vmatmul.mubr.f32.gmra.mxu0 %v473
    %v591 = vpop.f32.mrf.mxu0
    %v592 = vadd.f32 0.0, %v591
    %v593 = vpop.f32.mrf.mxu0
    %594 = vmatprep.mubr.f32.mxu0 %v479
    %595 = vmatmul.mubr.f32.gmra.mxu0 %v477
    %v596 = vpop.f32.mrf.mxu0
    %v597 = vadd.f32 0.0, %v596
    %v598 = vpop.f32.mrf.mxu0
    %599 = vmatprep.mubr.f32.mxu0 %v483
    %600 = vmatmul.mubr.f32.gmra.mxu0 %v481
    %v601 = vpop.f32.mrf.mxu0
    %v602 = vadd.f32 0.0, %v601
    %v603 = vpop.f32.mrf.mxu0
    %604 = vdwg.mxu0
    %v605 = vadd.f32 %v378, %v567
    %v606 = vadd.f32 %v383, %v572
    %v607 = vadd.f32 %v388, %v577
    %v608 = vadd.f32 %v393, %v582
    %v609 = vadd.f32 %v398, %v587
    %v610 = vadd.f32 %v403, %v592
    %v611 = vadd.f32 %v408, %v597
    %v612 = vadd.f32 %v413, %v602
    %s613 = sld [smem:[#allocation2]]
    %v614 = vstv %s613
    %v615 = vadd.f32 %v605, %v614
    %v616 = vadd.f32 %v606, %v614
    %v617 = vadd.f32 %v607, %v614
    %v618 = vadd.f32 %v608, %v614
    %v619 = vadd.f32 %v609, %v614
    %v620 = vadd.f32 %v610, %v614
    %v621 = vadd.f32 %v611, %v614
    %v622 = vadd.f32 %v612, %v614
    %623 = vst [vmem:[#allocation8] sm:$0xff] %v615
    %624 = vst [vmem:[#allocation8 + $0x8] sm:$0xff] %v616
    %625 = vst [vmem:[#allocation8 + $0x10] sm:$0xff] %v617
    %626 = vst [vmem:[#allocation8 + $0x18] sm:$0xff] %v618
    %627 = vst [vmem:[#allocation8 + $0x20] sm:$0xff] %v619
    %628 = vst [vmem:[#allocation8 + $0x28] sm:$0xff] %v620
    %629 = vst [vmem:[#allocation8 + $0x30] sm:$0xff] %v621
    %630 = vst [vmem:[#allocation8 + $0x38] sm:$0xff] %v622
    // Predicated region
    $region22: #{tpu_custom_call.1} parent=1 // pred_check
      _
    $region23: #{tpu_custom_call.1} parent=1 // pred_check_branch
      %632 = sbr.rel (0) target = $region25
    $region24: #{tpu_custom_call.1} parent=1 // pred_region
      %s634 = ssub.s32 1024, 1024
      %635 = vsyncadd [#allocation5], %s634
      %s636 = sshll.u32 [#allocation8], 4
      %s637 = int_to_ptr.vmem [resolvable:$true] %s636
      %642 = dma.vmem_to_hbm [thread:$0]  %s637, 1024, %s3, [#allocation5], 128, 128, 8
    $region25: #{tpu_custom_call.1} parent=1 // pred_fallthru
      _
    // Predicated region
    $region26: #{tpu_custom_call.1} parent=1 // pred_check
      _
    $region27: #{tpu_custom_call.1} parent=1 // pred_check_branch
      %644 = sbr.rel (0) target = $region29
    $region28: #{tpu_custom_call.1} parent=1 // pred_region
      %645 = dma.done [#allocation5], 1024
    $region29: #{tpu_custom_call.1} parent=1 // pred_fallthru
      _
    %646 = vsyncpa [#allocation4], 1
    %647 = vsyncpa [#allocation7], 1
    %648 = vsyncpa [#allocation5], 1

</llo_original>
